<compile_context>
chip_gen: v6e
topology: v6e:2x2x1
jax: 0.10.0
libtpu: 0.0.40
codegen_flags: <defaults>
</compile_context>

<pallas_src>
import functools

import jax
import jax.numpy as jnp
import numpy as np
from jax import lax
from jax.experimental import pallas as pl
from jax.experimental.pallas import tpu as pltpu


def _round_up(n, m):
    return (n + m - 1) // m * m


def conv_block_kernel(x_ref, w1_ref, w2_ref, gb_ref, o_ref, y1_ref, *,
                      K: int, dilation: int, eps: float, seg_len: int):
    """Fully fused ConvBlock forward on lane-dense slabs.

    x_ref  : (C_in_p,  N*L)       input slab (compute dtype)
    w1_ref : (C_out_p, K*C_in_p)  conv1 weight, column order k*C_in_p + c
    w2_ref : (C_out_p, K*C_out_p) conv2 weight, column order k*C_out_p + c
    gb_ref : (C_out_p, 4)         f32 columns = [gamma1, beta1, gamma2, beta2]
    o_ref  : (C_out_p, N*L)       output slab
    y1_ref : (C_out_p, N*L)       VMEM scratch (compute dtype): layer-1 act
    """
    NL = x_ref.shape[1]
    pad = (K - 1) * dilation // 2
    inv_cnt = 1.0 / NL
    shifts = [k * dilation - pad for k in range(K)]

    def make_masks(nrows):
        # Per-segment lane position: built ONCE, reused for all K taps.
        j = lax.broadcasted_iota(jnp.int32, (nrows, NL), 1) % seg_len
        masks = []
        for s in shifts:
            if s == 0:
                masks.append(None)                 # always valid
            elif s > 0:
                masks.append(j < seg_len - s)
            else:
                masks.append(j >= -s)
        return masks

    masks1 = make_masks(x_ref.shape[0])
    masks2 = (masks1 if y1_ref.shape[0] == x_ref.shape[0]
              else make_masks(y1_ref.shape[0]))

    def layer(z, w, gamma, beta, masks):
        # im2col slab (K*C_pad, N*L): one XLU lane-rotate per tap on the full
        # N*L axis; the precomputed masks realize both the 'same' zero padding
        # and the isolation between batch segments.
        parts = []
        for s, m in zip(shifts, masks):
            blk = z if s == 0 else pltpu.roll(z, shift=(-s) % NL, axis=1)
            if m is not None:
                blk = jnp.where(m, blk, jnp.zeros_like(blk))
            parts.append(blk)
        slab = jnp.concatenate(parts, axis=0)          # sublane-tile aligned
        # One MXU contraction: bf16 operands, f32 accumulation.
        y = jnp.dot(w, slab, preferred_element_type=jnp.float32)
        # Training-mode BN statistics over all N*L lanes (single pass).
        mean = jnp.sum(y, axis=1, keepdims=True) * inv_cnt
        ex2 = jnp.sum(y * y, axis=1, keepdims=True) * inv_cnt
        var = jnp.maximum(ex2 - mean * mean, 0.0)      # clamp f32 cancellation
        scale = gamma * lax.rsqrt(var + eps)
        return jnp.maximum((y - mean) * scale + beta, 0.0)

    # ---- layer 1: conv1 -> bn1(train) -> relu  (stays in VMEM) ----
    y1 = layer(x_ref[...], w1_ref[...], gb_ref[:, 0:1], gb_ref[:, 1:2], masks1)
    y1_ref[...] = y1.astype(y1_ref.dtype)

    # ---- layer 2: conv2 -> bn2(train) -> relu ----
    y2 = layer(y1_ref[...], w2_ref[...], gb_ref[:, 2:3], gb_ref[:, 3:4], masks2)
    o_ref[...] = y2.astype(o_ref.dtype)


def conv_block(x, params, *, dilation: int = 9, eps: float = 1e-5,
               compute_dtype=jnp.bfloat16):
    """x: (N, C_in, L); conv weights in PyTorch (C_out, C_in, K) layout."""
    N, C_in, L = x.shape
    C_out, _, K = params["w1"].shape
    assert (K - 1) * dilation % 2 == 0, \
        "'same' padding needs even (K-1)*dilation (odd K is always fine)"

    C_in_p = _round_up(C_in, 8)
    C_out_p = _round_up(C_out, 8)
    NL = N * L

    # Lane-dense input slab (C_in_p, N*L), channel padding to 8 sublanes.
    x_slab = jnp.transpose(x, (1, 0, 2)).reshape(C_in, NL)
    x_slab = jnp.pad(x_slab, ((0, C_in_p - C_in), (0, 0))).astype(compute_dtype)

    # (C_out, C_in, K) -> (C_out_p, K*C_in_p) with column order k*C_in_p + c
    # and zero rows/cols matching the channel padding.  Conv biases are
    # intentionally NOT passed: training-mode BN mean subtraction cancels them.
    def prep_w(w, cin, cin_p):
        w = jnp.transpose(w, (0, 2, 1))                      # (C_out, K, C_in)
        w = jnp.pad(w, ((0, C_out_p - C_out), (0, 0), (0, cin_p - cin)))
        return w.reshape(C_out_p, K * cin_p).astype(compute_dtype)

    w1 = prep_w(params["w1"], C_in, C_in_p)
    w2 = prep_w(params["w2"], C_out, C_out_p)

    gb = jnp.stack([params["g1"], params["be1"], params["g2"], params["be2"]],
                   axis=1).astype(jnp.float32)
    gb = jnp.pad(gb, ((0, C_out_p - C_out), (0, 0)))         # (C_out_p, 4)

    kernel = functools.partial(conv_block_kernel, K=K, dilation=dilation,
                               eps=eps, seg_len=L)

    itemsize = jnp.dtype(compute_dtype).itemsize
    cost = pl.CostEstimate(
        flops=2 * NL * K * (C_out_p * C_in_p + C_out_p * C_out_p),
        transcendentals=2 * C_out_p,
        bytes_accessed=((x_slab.size + w1.size + w2.size) * itemsize
                        + gb.size * 4 + C_out_p * NL * x.dtype.itemsize))

    vmem = pl.BlockSpec(memory_space=pltpu.MemorySpace.VMEM)
    # TODO(synk): for realistic UTime sizes (long L / wide C) add an L-tiled
    # grid with BN partial-sum scratch ("arbitrary" reduction axis, "parallel"
    # batch/tile axis for v7x megacore) and a pad-wide halo between tiles;
    # size tiles for the 64 MiB/TC VMEM budget on v7x.  At these shapes the
    # whole problem fits VMEM on all generations, so the kernel is gridless.
    out_slab = pl.pallas_call(
        kernel,
        out_shape=jax.ShapeDtypeStruct((C_out_p, NL), x.dtype),
        in_specs=[vmem] * 4,
        out_specs=vmem,
        scratch_shapes=[pltpu.VMEM((C_out_p, NL), compute_dtype)],
        cost_estimate=cost,
    )(x_slab, w1, w2, gb)

    # Back to PyTorch (N, C_out, L) layout; drop the channel padding.
    return jnp.transpose(out_slab[:C_out].reshape(C_out, N, L), (1, 0, 2))


# ---------------- plain-JAX reference (for correctness check) ----------------
def _ref_conv1d_same(x, w_oik, b, dilation):
    pad = (w_oik.shape[2] - 1) * dilation // 2
    y = lax.conv_general_dilated(
        x, w_oik, window_strides=(1,), padding=[(pad, pad)],
        rhs_dilation=(dilation,), dimension_numbers=("NCH", "OIH", "NCH"))
    return y + b.reshape(1, -1, 1)


def _ref_bn_relu(y, gamma, beta, eps=1e-5):
    mean = y.mean(axis=(0, 2), keepdims=True)
    var = ((y - mean) ** 2).mean(axis=(0, 2), keepdims=True)
    y = (y - mean) * lax.rsqrt(var + eps) * gamma.reshape(1, -1, 1) \
        + beta.reshape(1, -1, 1)
    return jnp.maximum(y, 0.0)


def _ref_conv_block(x, p, dilation=9):
    y = _ref_bn_relu(_ref_conv1d_same(x, p["w1"], p["b1"], dilation),
                     p["g1"], p["be1"])
    y = _ref_bn_relu(_ref_conv1d_same(y, p["w2"], p["b2"], dilation),
                     p["g2"], p["be2"])
    return y


if __name__ == "__main__":
    # Small shapes consistent with the module: batch=2, in_ch=4, out_ch=8, L=128
    N, C_IN, C_OUT, L, K, DIL = 2, 4, 8, 128, 5, 9

    key = jax.random.PRNGKey(0)
    ks = jax.random.split(key, 9)
    x = jax.random.normal(ks[0], (N, C_IN, L), jnp.float32)

    params = {
        # conv weights in PyTorch Conv1d layout (C_out, C_in, K)
        "w1": jax.random.normal(ks[1], (C_OUT, C_IN, K), jnp.float32) * 0.2,
        "b1": jax.random.normal(ks[2], (C_OUT,), jnp.float32) * 0.1,
        "g1": 1.0 + 0.1 * jax.random.normal(ks[3], (C_OUT,), jnp.float32),
        "be1": 0.1 * jax.random.normal(ks[4], (C_OUT,), jnp.float32),
        "w2": jax.random.normal(ks[5], (C_OUT, C_OUT, K), jnp.float32) * 0.2,
        "b2": jax.random.normal(ks[6], (C_OUT,), jnp.float32) * 0.1,
        "g2": 1.0 + 0.1 * jax.random.normal(ks[7], (C_OUT,), jnp.float32),
        "be2": 0.1 * jax.random.normal(ks[8], (C_OUT,), jnp.float32),
    }

    ref = jax.block_until_ready(_ref_conv_block(x, params, dilation=DIL))

    # Exact-path check (f32 MXU operands) — verifies the fused kernel math.
    out_f32 = jax.block_until_ready(
        conv_block(x, params, dilation=DIL, compute_dtype=jnp.float32))
    np.testing.assert_allclose(np.asarray(out_f32), np.asarray(ref),
                               rtol=1e-4, atol=1e-4)

    # Default fast path: bf16 MXU operands, f32 accumulation & BN epilogue
    # (loose tolerance is the expected bf16-operand rounding error).
    out = jax.block_until_ready(conv_block(x, params, dilation=DIL))
    np.testing.assert_allclose(np.asarray(out), np.asarray(ref),
                               rtol=1e-1, atol=1e-1)

    print("KERNEL_OK")
</pallas_src>

<mosaic_0001>
module attributes {stable_mosaic.version = 11 : i64} {
  func.func @conv_block_kernel(%arg0: memref<8x256xf32, #tpu.memory_space<vmem>>, %arg1: memref<8x40xf32, #tpu.memory_space<vmem>>, %arg2: memref<8x40xf32, #tpu.memory_space<vmem>>, %arg3: memref<8x4xf32, #tpu.memory_space<vmem>>, %arg4: memref<8x256xf32, #tpu.memory_space<vmem>>, %arg5: memref<8x256xf32, #tpu.memory_space<vmem>>) attributes {dimension_semantics = [], scalar_prefetch = 0 : i64, scratch_operands = 1 : i64, tpu.core_type = #tpu.core_type<tc>} {
    %0 = tpu.iota {dimensions = array<i32: 1>} : vector<8x256xi32>
    %c128_i32 = arith.constant 128 : i32
    %c0_i32 = arith.constant 0 : i32
    %1 = arith.cmpi eq, %c128_i32, %c0_i32 : i32
    %c1_i32 = arith.constant 1 : i32
    %2 = arith.select %1, %c1_i32, %c128_i32 : i32
    %3 = vector.broadcast %2 : i32 to vector<8x256xi32>
    %4 = arith.remsi %0, %3 : vector<8x256xi32>
    %c0_i32_0 = arith.constant 0 : i32
    %5 = vector.broadcast %c0_i32_0 : i32 to vector<8x256xi32>
    %6 = arith.cmpi ne, %4, %5 : vector<8x256xi32>
    %c0_i32_1 = arith.constant 0 : i32
    %7 = vector.broadcast %c0_i32_1 : i32 to vector<8x256xi32>
    %8 = arith.cmpi slt, %4, %7 : vector<8x256xi32>
    %c0_i32_2 = arith.constant 0 : i32
    %9 = arith.cmpi slt, %2, %c0_i32_2 : i32
    %10 = vector.broadcast %9 : i1 to vector<8x256xi1>
    %11 = vector.broadcast %10 : vector<8x256xi1> to vector<8x256xi1>
    %12 = arith.xori %8, %11 : vector<8x256xi1>
    %13 = arith.andi %12, %6 : vector<8x256xi1>
    %14 = vector.broadcast %2 : i32 to vector<8x256xi32>
    %15 = arith.addi %4, %14 : vector<8x256xi32>
    %16 = arith.select %13, %15, %4 : vector<8x256xi1>, vector<8x256xi32>
    %c18_i32 = arith.constant 18 : i32
    %17 = vector.broadcast %c18_i32 : i32 to vector<8x256xi32>
    %18 = arith.cmpi sge, %16, %17 : vector<8x256xi32>
    %c9_i32 = arith.constant 9 : i32
    %19 = vector.broadcast %c9_i32 : i32 to vector<8x256xi32>
    %20 = arith.cmpi sge, %16, %19 : vector<8x256xi32>
    %c119_i32 = arith.constant 119 : i32
    %21 = vector.broadcast %c119_i32 : i32 to vector<8x256xi32>
    %22 = arith.cmpi slt, %16, %21 : vector<8x256xi32>
    %c110_i32 = arith.constant 110 : i32
    %23 = vector.broadcast %c110_i32 : i32 to vector<8x256xi32>
    %24 = arith.cmpi slt, %16, %23 : vector<8x256xi32>
    %c0 = arith.constant 0 : index
    %c0_3 = arith.constant 0 : index
    %25 = vector.load %arg0[%c0, %c0_3] : memref<8x256xf32, #tpu.memory_space<vmem>>, vector<8x256xf32>
    %c0_4 = arith.constant 0 : index
    %c0_5 = arith.constant 0 : index
    %26 = vector.load %arg1[%c0_4, %c0_5] : memref<8x40xf32, #tpu.memory_space<vmem>>, vector<8x40xf32>
    %c0_6 = arith.constant 0 : index
    %c0_7 = arith.constant 0 : index
    %27 = vector.load %arg3[%c0_6, %c0_7] : memref<8x4xf32, #tpu.memory_space<vmem>>, vector<8x1xf32>
    %c0_8 = arith.constant 0 : index
    %c1 = arith.constant 1 : index
    %28 = vector.load %arg3[%c0_8, %c1] : memref<8x4xf32, #tpu.memory_space<vmem>>, vector<8x1xf32>
    %c18_i32_9 = arith.constant 18 : i32
    %29 = tpu.dynamic_rotate %25 by %c18_i32_9 dim 1 : vector<8x256xf32>, i32 -> vector<8x256xf32>
    %cst = arith.constant 0.000000e+00 : f32
    %30 = vector.broadcast %cst : f32 to vector<8x256xf32>
    %31 = arith.select %18, %29, %30 : vector<8x256xi1>, vector<8x256xf32>
    %c9_i32_10 = arith.constant 9 : i32
    %32 = tpu.dynamic_rotate %25 by %c9_i32_10 dim 1 : vector<8x256xf32>, i32 -> vector<8x256xf32>
    %cst_11 = arith.constant 0.000000e+00 : f32
    %33 = vector.broadcast %cst_11 : f32 to vector<8x256xf32>
    %34 = arith.select %20, %32, %33 : vector<8x256xi1>, vector<8x256xf32>
    %c247_i32 = arith.constant 247 : i32
    %35 = tpu.dynamic_rotate %25 by %c247_i32 dim 1 : vector<8x256xf32>, i32 -> vector<8x256xf32>
    %cst_12 = arith.constant 0.000000e+00 : f32
    %36 = vector.broadcast %cst_12 : f32 to vector<8x256xf32>
    %37 = arith.select %22, %35, %36 : vector<8x256xi1>, vector<8x256xf32>
    %c238_i32 = arith.constant 238 : i32
    %38 = tpu.dynamic_rotate %25 by %c238_i32 dim 1 : vector<8x256xf32>, i32 -> vector<8x256xf32>
    %cst_13 = arith.constant 0.000000e+00 : f32
    %39 = vector.broadcast %cst_13 : f32 to vector<8x256xf32>
    %40 = arith.select %24, %38, %39 : vector<8x256xi1>, vector<8x256xf32>
    %41 = tpu.concatenate %31, %34, %25, %37, %40 in 0 : vector<8x256xf32>, vector<8x256xf32>, vector<8x256xf32>, vector<8x256xf32>, vector<8x256xf32> -> vector<40x256xf32>
    %cst_14 = arith.constant dense<0.000000e+00> : vector<8x256xf32>
    %42 = tpu.matmul %26, %41, %cst_14 {dimension_numbers = #tpu.dot_dimension_numbers<[1], [0], [0], [1], [0, 0, 1, 1], [], []>} : vector<8x40xf32>, vector<40x256xf32>, vector<8x256xf32> -> vector<8x256xf32>
    %cst_15 = arith.constant dense<0.000000e+00> : vector<8xf32>
    %43 = vector.multi_reduction <add>, %42, %cst_15 [1] : vector<8x256xf32> to vector<8xf32>
    %44 = vector.shape_cast %43 : vector<8xf32> to vector<8x1xf32>
    %cst_16 = arith.constant 3.906250e-03 : f32
    %45 = vector.broadcast %cst_16 : f32 to vector<8x1xf32>
    %46 = arith.mulf %44, %45 : vector<8x1xf32>
    %47 = arith.mulf %42, %42 : vector<8x256xf32>
    %cst_17 = arith.constant dense<0.000000e+00> : vector<8xf32>
    %48 = vector.multi_reduction <add>, %47, %cst_17 [1] : vector<8x256xf32> to vector<8xf32>
    %49 = vector.shape_cast %48 : vector<8xf32> to vector<8x1xf32>
    %cst_18 = arith.constant 3.906250e-03 : f32
    %50 = vector.broadcast %cst_18 : f32 to vector<8x1xf32>
    %51 = arith.mulf %49, %50 : vector<8x1xf32>
    %52 = arith.mulf %46, %46 : vector<8x1xf32>
    %53 = arith.subf %51, %52 : vector<8x1xf32>
    %cst_19 = arith.constant 0.000000e+00 : f32
    %54 = vector.broadcast %cst_19 : f32 to vector<8x1xf32>
    %55 = arith.maximumf %53, %54 : vector<8x1xf32>
    %cst_20 = arith.constant 9.99999974E-6 : f32
    %56 = vector.broadcast %cst_20 : f32 to vector<8x1xf32>
    %57 = arith.addf %55, %56 : vector<8x1xf32>
    %58 = math.rsqrt %57 : vector<8x1xf32>
    %59 = arith.mulf %27, %58 : vector<8x1xf32>
    %60 = vector.broadcast %46 : vector<8x1xf32> to vector<8x256xf32>
    %61 = arith.subf %42, %60 : vector<8x256xf32>
    %62 = vector.broadcast %59 : vector<8x1xf32> to vector<8x256xf32>
    %63 = arith.mulf %61, %62 : vector<8x256xf32>
    %64 = vector.broadcast %28 : vector<8x1xf32> to vector<8x256xf32>
    %65 = arith.addf %63, %64 : vector<8x256xf32>
    %cst_21 = arith.constant 0.000000e+00 : f32
    %66 = vector.broadcast %cst_21 : f32 to vector<8x256xf32>
    %67 = arith.maximumf %65, %66 : vector<8x256xf32>
    %c0_22 = arith.constant 0 : index
    %c0_23 = arith.constant 0 : index
    %68 = vector.load %arg5[%c0_22, %c0_23] : memref<8x256xf32, #tpu.memory_space<vmem>>, vector<8x256xf32>
    tpu.vector_store %arg5[%c0_22, %c0_23], %67 {strides = array<i32>} : memref<8x256xf32, #tpu.memory_space<vmem>>, vector<8x256xf32>,
    %c0_24 = arith.constant 0 : index
    %c0_25 = arith.constant 0 : index
    %69 = vector.load %arg5[%c0_24, %c0_25] : memref<8x256xf32, #tpu.memory_space<vmem>>, vector<8x256xf32>
    %c0_26 = arith.constant 0 : index
    %c0_27 = arith.constant 0 : index
    %70 = vector.load %arg2[%c0_26, %c0_27] : memref<8x40xf32, #tpu.memory_space<vmem>>, vector<8x40xf32>
    %c0_28 = arith.constant 0 : index
    %c2 = arith.constant 2 : index
    %71 = vector.load %arg3[%c0_28, %c2] : memref<8x4xf32, #tpu.memory_space<vmem>>, vector<8x1xf32>
    %c0_29 = arith.constant 0 : index
    %c3 = arith.constant 3 : index
    %72 = vector.load %arg3[%c0_29, %c3] : memref<8x4xf32, #tpu.memory_space<vmem>>, vector<8x1xf32>
    %c18_i32_30 = arith.constant 18 : i32
    %73 = tpu.dynamic_rotate %69 by %c18_i32_30 dim 1 : vector<8x256xf32>, i32 -> vector<8x256xf32>
    %cst_31 = arith.constant 0.000000e+00 : f32
    %74 = vector.broadcast %cst_31 : f32 to vector<8x256xf32>
    %75 = arith.select %18, %73, %74 : vector<8x256xi1>, vector<8x256xf32>
    %c9_i32_32 = arith.constant 9 : i32
    %76 = tpu.dynamic_rotate %69 by %c9_i32_32 dim 1 : vector<8x256xf32>, i32 -> vector<8x256xf32>
    %cst_33 = arith.constant 0.000000e+00 : f32
    %77 = vector.broadcast %cst_33 : f32 to vector<8x256xf32>
    %78 = arith.select %20, %76, %77 : vector<8x256xi1>, vector<8x256xf32>
    %c247_i32_34 = arith.constant 247 : i32
    %79 = tpu.dynamic_rotate %69 by %c247_i32_34 dim 1 : vector<8x256xf32>, i32 -> vector<8x256xf32>
    %cst_35 = arith.constant 0.000000e+00 : f32
    %80 = vector.broadcast %cst_35 : f32 to vector<8x256xf32>
    %81 = arith.select %22, %79, %80 : vector<8x256xi1>, vector<8x256xf32>
    %c238_i32_36 = arith.constant 238 : i32
    %82 = tpu.dynamic_rotate %69 by %c238_i32_36 dim 1 : vector<8x256xf32>, i32 -> vector<8x256xf32>
    %cst_37 = arith.constant 0.000000e+00 : f32
    %83 = vector.broadcast %cst_37 : f32 to vector<8x256xf32>
    %84 = arith.select %24, %82, %83 : vector<8x256xi1>, vector<8x256xf32>
    %85 = tpu.concatenate %75, %78, %69, %81, %84 in 0 : vector<8x256xf32>, vector<8x256xf32>, vector<8x256xf32>, vector<8x256xf32>, vector<8x256xf32> -> vector<40x256xf32>
    %cst_38 = arith.constant dense<0.000000e+00> : vector<8x256xf32>
    %86 = tpu.matmul %70, %85, %cst_38 {dimension_numbers = #tpu.dot_dimension_numbers<[1], [0], [0], [1], [0, 0, 1, 1], [], []>} : vector<8x40xf32>, vector<40x256xf32>, vector<8x256xf32> -> vector<8x256xf32>
    %cst_39 = arith.constant dense<0.000000e+00> : vector<8xf32>
    %87 = vector.multi_reduction <add>, %86, %cst_39 [1] : vector<8x256xf32> to vector<8xf32>
    %88 = vector.shape_cast %87 : vector<8xf32> to vector<8x1xf32>
    %cst_40 = arith.constant 3.906250e-03 : f32
    %89 = vector.broadcast %cst_40 : f32 to vector<8x1xf32>
    %90 = arith.mulf %88, %89 : vector<8x1xf32>
    %91 = arith.mulf %86, %86 : vector<8x256xf32>
    %cst_41 = arith.constant dense<0.000000e+00> : vector<8xf32>
    %92 = vector.multi_reduction <add>, %91, %cst_41 [1] : vector<8x256xf32> to vector<8xf32>
    %93 = vector.shape_cast %92 : vector<8xf32> to vector<8x1xf32>
    %cst_42 = arith.constant 3.906250e-03 : f32
    %94 = vector.broadcast %cst_42 : f32 to vector<8x1xf32>
    %95 = arith.mulf %93, %94 : vector<8x1xf32>
    %96 = arith.mulf %90, %90 : vector<8x1xf32>
    %97 = arith.subf %95, %96 : vector<8x1xf32>
    %cst_43 = arith.constant 0.000000e+00 : f32
    %98 = vector.broadcast %cst_43 : f32 to vector<8x1xf32>
    %99 = arith.maximumf %97, %98 : vector<8x1xf32>
    %cst_44 = arith.constant 9.99999974E-6 : f32
    %100 = vector.broadcast %cst_44 : f32 to vector<8x1xf32>
    %101 = arith.addf %99, %100 : vector<8x1xf32>
    %102 = math.rsqrt %101 : vector<8x1xf32>
    %103 = arith.mulf %71, %102 : vector<8x1xf32>
    %104 = vector.broadcast %90 : vector<8x1xf32> to vector<8x256xf32>
    %105 = arith.subf %86, %104 : vector<8x256xf32>
    %106 = vector.broadcast %103 : vector<8x1xf32> to vector<8x256xf32>
    %107 = arith.mulf %105, %106 : vector<8x256xf32>
    %108 = vector.broadcast %72 : vector<8x1xf32> to vector<8x256xf32>
    %109 = arith.addf %107, %108 : vector<8x256xf32>
    %cst_45 = arith.constant 0.000000e+00 : f32
    %110 = vector.broadcast %cst_45 : f32 to vector<8x256xf32>
    %111 = arith.maximumf %109, %110 : vector<8x256xf32>
    %c0_46 = arith.constant 0 : index
    %c0_47 = arith.constant 0 : index
    %112 = vector.load %arg4[%c0_46, %c0_47] : memref<8x256xf32, #tpu.memory_space<vmem>>, vector<8x256xf32>
    tpu.vector_store %arg4[%c0_46, %c0_47], %111 {strides = array<i32>} : memref<8x256xf32, #tpu.memory_space<vmem>>, vector<8x256xf32>,
    return
  }
}

</mosaic_0001>

<llo_original>
// kernel: tpu_custom_call.1
$region0: #{tpu_custom_call.1}
  #allocation0 [shape = 'u32[]', space=smem, size = 0x4, offset = 0x4, fixed_abs, tag = 'smem constant byte address 0x4 - core index']
  #allocation1 [shape = 'u32[144,128]{1,0:T(1,128)}', space=vmem, size = 0x12000, scoped, tag = 'internal scratch']
  #allocation2 [shape = 'f32[8,256]{1,0:T(8,128)}', space=vmem, size = 0x2000, scoped, tag = 'scratch operand']
  %s0 = inlined_call_operand.hbm [shape: f32[8,256], index: 0, kind: input, shape index: {}]
  %s1 = inlined_call_operand.vmem [shape: f32[8,40], index: 1, kind: input, shape index: {}]
  %s2 = inlined_call_operand.hbm [shape: f32[8,40], index: 2, kind: input, shape index: {}]
  %s3 = inlined_call_operand.vmem [shape: f32[8,4], index: 3, kind: input, shape index: {}]
  %s4 = inlined_call_operand.hbm [shape: f32[8,256], index: 4, kind: output, shape index: {}]
  %s5 = sld [smem:[#allocation0]]
  $region34: #{tpu_custom_call.1} parent=0
    _
  %s7 = ssub.s32 1, %s5
  %s8 = scalar_select 0, %s7, %s5
  $region1: #{tpu_custom_call.1} parent=0
    #allocation3 [shape = 'u8[8192]{0}', space=vmem, size = 0x2000, scoped, tag = 'input window, operand 0, single buffered']
    #allocation4 [shape = 's32[1]{0}', space=sflag, size = 0x4, scoped, tag = 'scoped memory for tpu_custom_call.1']
    #allocation5 [shape = 's32[1]{0}', space=sflag, size = 0x4, scoped, tag = 'scoped memory for tpu_custom_call.1']
    #allocation6 [shape = 'u8[4096]{0}', space=vmem, size = 0x1000, scoped, tag = 'input window, operand 2, single buffered']
    #allocation7 [shape = 's32[1]{0}', space=sflag, size = 0x4, scoped, tag = 'scoped memory for tpu_custom_call.1']
    #allocation8 [shape = 'u8[8192]{0}', space=vmem, size = 0x2000, scoped, tag = 'output window, operand 0, single buffered']
    %9 = vsyncpa [#allocation4], 0
    %10 = vsyncpa [#allocation7], 0
    %11 = vsyncpa [#allocation5], 0
    // Predicated region
    $region2: #{tpu_custom_call.1} parent=1 // pred_check
      _
    $region3: #{tpu_custom_call.1} parent=1 // pred_check_branch
      %13 = sbr.rel (0) target = $region5
    $region4: #{tpu_custom_call.1} parent=1 // pred_region
      %s15 = ssub.s32 256, 256
      %16 = vsyncadd [#allocation4], %s15
      %s18 = sshll.u32 [#allocation3], 4
      %s19 = int_to_ptr.vmem [resolvable:$true] %s18
      %21 = dma.hbm_to_vmem [thread:$0]  %s0, 256, %s19, [#allocation4]
    $region5: #{tpu_custom_call.1} parent=1 // pred_fallthru
      _
    // Predicated region
    $region6: #{tpu_custom_call.1} parent=1 // pred_check
      _
    $region7: #{tpu_custom_call.1} parent=1 // pred_check_branch
      %23 = sbr.rel (0) target = $region9
    $region8: #{tpu_custom_call.1} parent=1 // pred_region
      _
    $region9: #{tpu_custom_call.1} parent=1 // pred_fallthru
      _
    // Predicated region
    $region10: #{tpu_custom_call.1} parent=1 // pred_check
      _
    $region11: #{tpu_custom_call.1} parent=1 // pred_check_branch
      %25 = sbr.rel (0) target = $region13
    $region12: #{tpu_custom_call.1} parent=1 // pred_region
      %s27 = ssub.s32 128, 128
      %28 = vsyncadd [#allocation7], %s27
      %s30 = sshll.u32 [#allocation6], 4
      %s31 = int_to_ptr.vmem [resolvable:$true] %s30
      %33 = dma.hbm_to_vmem [thread:$0]  %s2, 128, %s31, [#allocation7]
    $region13: #{tpu_custom_call.1} parent=1 // pred_fallthru
      _
    // Predicated region
    $region14: #{tpu_custom_call.1} parent=1 // pred_check
      _
    $region15: #{tpu_custom_call.1} parent=1 // pred_check_branch
      %35 = sbr.rel (0) target = $region17
    $region16: #{tpu_custom_call.1} parent=1 // pred_region
      _
    $region17: #{tpu_custom_call.1} parent=1 // pred_fallthru
      _
    // Predicated region
    $region18: #{tpu_custom_call.1} parent=1 // pred_check
      _
    $region19: #{tpu_custom_call.1} parent=1 // pred_check_branch
      %37 = sbr.rel (0) target = $region21
    $region20: #{tpu_custom_call.1} parent=1 // pred_region
      %38 = dma.done [#allocation4], 256
    $region21: #{tpu_custom_call.1} parent=1 // pred_fallthru
      _
    // Predicated region
    $region22: #{tpu_custom_call.1} parent=1 // pred_check
      _
    $region23: #{tpu_custom_call.1} parent=1 // pred_check_branch
      %40 = sbr.rel (0) target = $region25
    $region24: #{tpu_custom_call.1} parent=1 // pred_region
      %41 = dma.done [#allocation7], 128
    $region25: #{tpu_custom_call.1} parent=1 // pred_fallthru
      _
    %v42 = vlaneseq
    %v43 = vand.u32 %v42, 127
    %v44 = vadd.s32 %v43, 128
    %vm45 = vcmp.lt.s32.totalorder %v43, 0
    %v46 = vsub.s32 0, %v43
    %v47 = vsel %vm45, %v46, %v43
    %v48 = vshrl.u32 %v47, 7
    %v49 = vand.u32 %v47, 127
    %v50 = vsub.s32 0, %v49
    %v51 = vsel %vm45, %v50, %v49
    %vm52 = vcmp.lt.s32.totalorder %v44, 0
    %v53 = vsub.s32 0, %v44
    %v54 = vsel %vm52, %v53, %v44
    %v55 = vshrl.u32 %v54, 7
    %v56 = vand.u32 %v54, 127
    %v57 = vsub.s32 0, %v56
    %v58 = vsel %vm52, %v57, %v56
    %vm59 = vcmp.ne.s32.totalorder %v51, 0
    %vm60 = vcmp.ne.s32.totalorder %v58, 0
    %vm61 = vcmp.lt.s32.totalorder %v51, 0
    %vm62 = vcmp.lt.s32.totalorder %v58, 0
    %vm63 = vmand %vm61, %vm59
    %vm64 = vmand %vm62, %vm60
    %v65 = vadd.s32 %v51, 128
    %v66 = vadd.s32 %v58, 128
    %v67 = vsel %vm63, %v65, %v51
    %v68 = vsel %vm64, %v66, %v58
    %vm69 = vcmp.ge.s32.totalorder %v67, 18
    %vm70 = vcmp.ge.s32.totalorder %v68, 18
    %vm71 = vcmp.ge.s32.totalorder %v67, 9
    %vm72 = vcmp.ge.s32.totalorder %v68, 9
    %vm73 = vcmp.lt.s32.totalorder %v67, 119
    %vm74 = vcmp.lt.s32.totalorder %v68, 119
    %vm75 = vcmp.lt.s32.totalorder %v67, 110
    %vm76 = vcmp.lt.s32.totalorder %v68, 110
    %v77 = vld [vmem:[#allocation3] sm:$0xff]
    %v78 = vld [vmem:[#allocation3 + $0x8] sm:$0xff]
    %v79 = vld [vmem:[%s1] sm:$0xff]
    %v80 = vld [vmem:[%s3] sm:$0xff]
    %81 = vrot.lane.b32.xlu0 %v77, 18
    %v82 = vpop.permute.xlu0 %81
    %83 = vrot.lane.b32.xlu0 %v78, 18
    %v84 = vpop.permute.xlu0 %83
    %vm85 = vcmp.lt.s32.totalorder %v43, 18
    %v86 = vsel %vm85, %v82, %v84
    %v87 = vsel %vm85, %v84, %v82
    %v88 = vsel %vm69, %v87, 0.0
    %v89 = vsel %vm70, %v86, 0.0
    %90 = vrot.lane.b32.xlu0 %v77, 9
    %v91 = vpop.permute.xlu0 %90
    %92 = vrot.lane.b32.xlu0 %v78, 9
    %v93 = vpop.permute.xlu0 %92
    %vm94 = vcmp.lt.s32.totalorder %v43, 9
    %v95 = vsel %vm94, %v91, %v93
    %v96 = vsel %vm94, %v93, %v91
    %v97 = vsel %vm71, %v96, 0.0
    %v98 = vsel %vm72, %v95, 0.0
    %99 = vrot.lane.b32.xlu0 %v77, 119
    %v100 = vpop.permute.xlu0 %99
    %101 = vrot.lane.b32.xlu0 %v78, 119
    %v102 = vpop.permute.xlu0 %101
    %vm103 = vcmp.lt.s32.totalorder %v43, 119
    %v104 = vsel %vm103, %v100, %v102
    %v105 = vsel %vm103, %v102, %v100
    %v106 = vsel %vm73, %v104, 0.0
    %v107 = vsel %vm74, %v105, 0.0
    %108 = vrot.lane.b32.xlu0 %v77, 110
    %v109 = vpop.permute.xlu0 %108
    %110 = vrot.lane.b32.xlu0 %v78, 110
    %v111 = vpop.permute.xlu0 %110
    %vm112 = vcmp.lt.s32.totalorder %v43, 110
    %v113 = vsel %vm112, %v109, %v111
    %v114 = vsel %vm112, %v111, %v109
    %v115 = vsel %vm75, %v113, 0.0
    %v116 = vsel %vm76, %v114, 0.0
    %vm117 = vcmask 326656
    %v119 = vsel %vm117, %v79, 0
    %121 = vmatprep.subr.mxu0 0.0
    %122 = vmatpush1.msra.mxu0 0.0
    %123 = vmatprep.subr.mxu0 0.0
    %124 = vmatpush1.msra.mxu0 0.0
    %125 = vmatprep.subr.mxu0 0.0
    %126 = vmatpush1.msra.mxu0 0.0
    %127 = vmatprep.subr.mxu0 0.0
    %128 = vmatpush1.msra.mxu0 0.0
    %129 = vmatprep.subr.mxu0 0.0
    %130 = vmatpush1.msra.mxu0 0.0
    %131 = vmatprep.subr.mxu0 0.0
    %132 = vmatpush1.msra.mxu0 0.0
    %133 = vmatprep.subr.mxu0 0.0
    %134 = vmatpush1.msra.mxu0 0.0
    %135 = vmatprep.subr.mxu0 0.0
    %136 = vmatpush1.msra.mxu0 0.0
    %137 = vmatprep.subr.mxu0 0.0
    %138 = vmatpush1.msra.mxu0 0.0
    %139 = vmatprep.subr.mxu0 0.0
    %140 = vmatpush1.msra.mxu0 0.0
    %141 = vmatprep.subr.mxu0 0.0
    %142 = vmatpush1.msra.mxu0 0.0
    %143 = vmatprep.subr.mxu0 %v116
    %144 = vmatpush1.msra.mxu0 %v115
    %145 = vmatprep.subr.mxu0 %v107
    %146 = vmatpush1.msra.mxu0 %v106
    %147 = vmatprep.subr.mxu0 %v78
    %148 = vmatpush1.msra.mxu0 %v77
    %149 = vmatprep.subr.mxu0 %v98
    %150 = vmatpush1.msra.mxu0 %v97
    %151 = vmatprep.subr.mxu0 %v89
    %152 = vmatpush1.msra.mxu0 %v88
    %153 = vmatprep.subr.mxu0 0.0
    %154 = vmatpush2.msra.mxu0 0.0
    %155 = vmatprep.subr.mxu0 0.0
    %156 = vmatpush2.msra.mxu0 0.0
    %157 = vmatprep.subr.mxu0 0.0
    %158 = vmatpush2.msra.mxu0 0.0
    %159 = vmatprep.subr.mxu0 0.0
    %160 = vmatpush2.msra.mxu0 0.0
    %161 = vmatprep.subr.mxu0 0.0
    %162 = vmatpush2.msra.mxu0 0.0
    %163 = vmatprep.subr.mxu0 0.0
    %164 = vmatpush2.msra.mxu0 0.0
    %165 = vmatprep.subr.mxu0 0.0
    %166 = vmatpush2.msra.mxu0 0.0
    %167 = vmatprep.subr.mxu0 0.0
    %168 = vmatpush2.msra.mxu0 0.0
    %169 = vmatprep.subr.mxu0 0.0
    %170 = vmatpush2.msra.mxu0 0.0
    %171 = vmatprep.subr.mxu0 0.0
    %172 = vmatpush2.msra.mxu0 0.0
    %173 = vmatprep.subr.mxu0 0.0
    %174 = vmatpush2.msra.mxu0 0.0
    %175 = vmatprep.subr.mxu0 0.0
    %176 = vmatpush2.msra.mxu0 0.0
    %177 = vmatprep.subr.mxu0 0.0
    %178 = vmatpush2.msra.mxu0 0.0
    %179 = vmatprep.subr.mxu0 0.0
    %180 = vmatpush2.msra.mxu0 0.0
    %181 = vmatprep.subr.mxu0 0.0
    %182 = vmatpush2.msra.mxu0 0.0
    %183 = vmatprep.subr.mxu0 0.0
    %184 = vmatpush2.msra.mxu0 0.0
    %185 = vmatprep.mubr.f32.mxu0 0.0
    %186 = vmatmul.mubr.f32.gmra.mxu0 %v119
    %v187 = vpop.f32.mrf.mxu0
    %v188 = vadd.f32 0.0, %v187
    %v189 = vpop.f32.mrf.mxu0
    %v190 = vadd.f32 0.0, %v189
    %191 = vdwg.mxu0
    %v192 = vadd.f32 %v188, %v190
    %193 = vadd.xlane.f32.xlu0 %v192
    %v194 = vpop.xlane.xlu0 %193
    %v195 = vmul.f32 %v194, 0.00390625
    %v196 = vmul.f32 %v188, %v188
    %v197 = vmul.f32 %v190, %v190
    %v198 = vadd.f32 %v196, %v197
    %199 = vadd.xlane.f32.xlu0 %v198
    %v200 = vpop.xlane.xlu0 %199
    %v201 = vmul.f32 %v200, 0.00390625
    %v202 = vmul.f32 %v195, %v195
    %v203 = vsub.f32 %v201, %v202
    %v204 = vmax.f32 %v203, 0.0
    %v205 = vadd.f32 %v204, 1e-05
    %v206 = vrsqrt.pop %v205
    %v207 = vmul.f32 %v80, %v206
    %v208 = vsub.f32 %v188, %v195
    %v209 = vsub.f32 %v190, %v195
    %211 = vset.pattern.permute.xlu0 0
    %212 = vperm.xlu0 %211, %v207
    %v213 = vpop.permute.xlu0 %212
    %v215 = vmul.f32 %v208, %v213
    %v216 = vmul.f32 %v209, %v213
    %218 = vset.pattern.permute.xlu0 1
    %219 = vperm.xlu0 %218, %v80
    %v220 = vpop.permute.xlu0 %219
    %v222 = vadd.f32 %v215, %v220
    %v223 = vadd.f32 %v216, %v220
    %v224 = vmax.f32 %v222, 0.0
    %v225 = vmax.f32 %v223, 0.0
    %226 = vst [vmem:[#allocation2] sm:$0xff] %v224
    %227 = vst [vmem:[#allocation2 + $0x8] sm:$0xff] %v225
    %v228 = vld [vmem:[#allocation2] sm:$0xff]
    %v229 = vld [vmem:[#allocation2 + $0x8] sm:$0xff]
    %v230 = vld [vmem:[#allocation6] sm:$0xff]
    %v231 = vld [vmem:[%s3] sm:$0xff]
    %232 = vrot.lane.b32.xlu0 %v228, 18
    %v233 = vpop.permute.xlu0 %232
    %234 = vrot.lane.b32.xlu0 %v229, 18
    %v235 = vpop.permute.xlu0 %234
    %v236 = vsel %vm85, %v233, %v235
    %v237 = vsel %vm85, %v235, %v233
    %v238 = vsel %vm69, %v237, 0.0
    %v239 = vsel %vm70, %v236, 0.0
    %240 = vrot.lane.b32.xlu0 %v228, 9
    %v241 = vpop.permute.xlu0 %240
    %242 = vrot.lane.b32.xlu0 %v229, 9
    %v243 = vpop.permute.xlu0 %242
    %v244 = vsel %vm94, %v241, %v243
    %v245 = vsel %vm94, %v243, %v241
    %v246 = vsel %vm71, %v245, 0.0
    %v247 = vsel %vm72, %v244, 0.0
    %248 = vrot.lane.b32.xlu0 %v228, 119
    %v249 = vpop.permute.xlu0 %248
    %250 = vrot.lane.b32.xlu0 %v229, 119
    %v251 = vpop.permute.xlu0 %250
    %v252 = vsel %vm103, %v249, %v251
    %v253 = vsel %vm103, %v251, %v249
    %v254 = vsel %vm73, %v252, 0.0
    %v255 = vsel %vm74, %v253, 0.0
    %256 = vrot.lane.b32.xlu0 %v228, 110
    %v257 = vpop.permute.xlu0 %256
    %258 = vrot.lane.b32.xlu0 %v229, 110
    %v259 = vpop.permute.xlu0 %258
    %v260 = vsel %vm112, %v257, %v259
    %v261 = vsel %vm112, %v259, %v257
    %v262 = vsel %vm75, %v260, 0.0
    %v263 = vsel %vm76, %v261, 0.0
    %v265 = vsel %vm117, %v230, 0
    %267 = vmatprep.subr.mxu0 0.0
    %268 = vmatpush1.msra.mxu0 0.0
    %269 = vmatprep.subr.mxu0 0.0
    %270 = vmatpush1.msra.mxu0 0.0
    %271 = vmatprep.subr.mxu0 0.0
    %272 = vmatpush1.msra.mxu0 0.0
    %273 = vmatprep.subr.mxu0 0.0
    %274 = vmatpush1.msra.mxu0 0.0
    %275 = vmatprep.subr.mxu0 0.0
    %276 = vmatpush1.msra.mxu0 0.0
    %277 = vmatprep.subr.mxu0 0.0
    %278 = vmatpush1.msra.mxu0 0.0
    %279 = vmatprep.subr.mxu0 0.0
    %280 = vmatpush1.msra.mxu0 0.0
    %281 = vmatprep.subr.mxu0 0.0
    %282 = vmatpush1.msra.mxu0 0.0
    %283 = vmatprep.subr.mxu0 0.0
    %284 = vmatpush1.msra.mxu0 0.0
    %285 = vmatprep.subr.mxu0 0.0
    %286 = vmatpush1.msra.mxu0 0.0
    %287 = vmatprep.subr.mxu0 0.0
    %288 = vmatpush1.msra.mxu0 0.0
    %289 = vmatprep.subr.mxu0 %v263
    %290 = vmatpush1.msra.mxu0 %v262
    %291 = vmatprep.subr.mxu0 %v255
    %292 = vmatpush1.msra.mxu0 %v254
    %293 = vmatprep.subr.mxu0 %v229
    %294 = vmatpush1.msra.mxu0 %v228
    %295 = vmatprep.subr.mxu0 %v247
    %296 = vmatpush1.msra.mxu0 %v246
    %297 = vmatprep.subr.mxu0 %v239
    %298 = vmatpush1.msra.mxu0 %v238
    %299 = vmatprep.subr.mxu0 0.0
    %300 = vmatpush2.msra.mxu0 0.0
    %301 = vmatprep.subr.mxu0 0.0
    %302 = vmatpush2.msra.mxu0 0.0
    %303 = vmatprep.subr.mxu0 0.0
    %304 = vmatpush2.msra.mxu0 0.0
    %305 = vmatprep.subr.mxu0 0.0
    %306 = vmatpush2.msra.mxu0 0.0
    %307 = vmatprep.subr.mxu0 0.0
    %308 = vmatpush2.msra.mxu0 0.0
    %309 = vmatprep.subr.mxu0 0.0
    %310 = vmatpush2.msra.mxu0 0.0
    %311 = vmatprep.subr.mxu0 0.0
    %312 = vmatpush2.msra.mxu0 0.0
    %313 = vmatprep.subr.mxu0 0.0
    %314 = vmatpush2.msra.mxu0 0.0
    %315 = vmatprep.subr.mxu0 0.0
    %316 = vmatpush2.msra.mxu0 0.0
    %317 = vmatprep.subr.mxu0 0.0
    %318 = vmatpush2.msra.mxu0 0.0
    %319 = vmatprep.subr.mxu0 0.0
    %320 = vmatpush2.msra.mxu0 0.0
    %321 = vmatprep.subr.mxu0 0.0
    %322 = vmatpush2.msra.mxu0 0.0
    %323 = vmatprep.subr.mxu0 0.0
    %324 = vmatpush2.msra.mxu0 0.0
    %325 = vmatprep.subr.mxu0 0.0
    %326 = vmatpush2.msra.mxu0 0.0
    %327 = vmatprep.subr.mxu0 0.0
    %328 = vmatpush2.msra.mxu0 0.0
    %329 = vmatprep.subr.mxu0 0.0
    %330 = vmatpush2.msra.mxu0 0.0
    %331 = vmatprep.mubr.f32.mxu0 0.0
    %332 = vmatmul.mubr.f32.gmra.mxu0 %v265
    %v333 = vpop.f32.mrf.mxu0
    %v334 = vadd.f32 0.0, %v333
    %v335 = vpop.f32.mrf.mxu0
    %v336 = vadd.f32 0.0, %v335
    %337 = vdwg.mxu0
    %v338 = vadd.f32 %v334, %v336
    %339 = vadd.xlane.f32.xlu0 %v338
    %v340 = vpop.xlane.xlu0 %339
    %v341 = vmul.f32 %v340, 0.00390625
    %v342 = vmul.f32 %v334, %v334
    %v343 = vmul.f32 %v336, %v336
    %v344 = vadd.f32 %v342, %v343
    %345 = vadd.xlane.f32.xlu0 %v344
    %v346 = vpop.xlane.xlu0 %345
    %v347 = vmul.f32 %v346, 0.00390625
    %v348 = vmul.f32 %v341, %v341
    %v349 = vsub.f32 %v347, %v348
    %v350 = vmax.f32 %v349, 0.0
    %v351 = vadd.f32 %v350, 1e-05
    %v352 = vrsqrt.pop %v351
    %v353 = vmul.f32 %v231, %v352
    %v354 = vsub.f32 %v334, %v341
    %v355 = vsub.f32 %v336, %v341
    %357 = vset.pattern.permute.xlu0 2
    %358 = vperm.xlu0 %357, %v353
    %v359 = vpop.permute.xlu0 %358
    %v361 = vmul.f32 %v354, %v359
    %v362 = vmul.f32 %v355, %v359
    %364 = vset.pattern.permute.xlu0 3
    %365 = vperm.xlu0 %364, %v231
    %v366 = vpop.permute.xlu0 %365
    %v368 = vadd.f32 %v361, %v366
    %v369 = vadd.f32 %v362, %v366
    %v370 = vmax.f32 %v368, 0.0
    %v371 = vmax.f32 %v369, 0.0
    %372 = vst [vmem:[#allocation8] sm:$0xff] %v370
    %373 = vst [vmem:[#allocation8 + $0x8] sm:$0xff] %v371
    // Predicated region
    $region26: #{tpu_custom_call.1} parent=1 // pred_check
      _
    $region27: #{tpu_custom_call.1} parent=1 // pred_check_branch
      %375 = sbr.rel (0) target = $region29
    $region28: #{tpu_custom_call.1} parent=1 // pred_region
      %s377 = ssub.s32 256, 256
      %378 = vsyncadd [#allocation5], %s377
      %s380 = sshll.u32 [#allocation8], 4
      %s381 = int_to_ptr.vmem [resolvable:$true] %s380
      %383 = dma.vmem_to_hbm [thread:$0]  %s381, 256, %s4, [#allocation5]
    $region29: #{tpu_custom_call.1} parent=1 // pred_fallthru
      _
    // Predicated region
    $region30: #{tpu_custom_call.1} parent=1 // pred_check
      _
    $region31: #{tpu_custom_call.1} parent=1 // pred_check_branch
      %385 = sbr.rel (0) target = $region33
    $region32: #{tpu_custom_call.1} parent=1 // pred_region
      %386 = dma.done [#allocation5], 256
    $region33: #{tpu_custom_call.1} parent=1 // pred_fallthru
      _
    %387 = vsyncpa [#allocation4], 1
    %388 = vsyncpa [#allocation7], 1
    %389 = vsyncpa [#allocation5], 1

</llo_original>
